<compile_context>
chip_gen: v7x
topology: tpu7x:2x2x1
jax: 0.10.0
libtpu: 0.0.40
codegen_flags: <defaults>
</compile_context>

<pallas_src>
import jax
import jax.numpy as jnp
from jax.experimental import pallas as pl
from jax.experimental.pallas import tpu as pltpu


def _mlp_kernel(x_ref, w1_ref, b1_ref, w2_ref, b2_ref, w3_ref, b3_ref, o_ref):
    # x_ref: (tm, D) tile of x in its natural batch-major layout.
    x = x_ref[...]

    # Layer 1: contract on D (minor dim of both operands): (16, D) x (tm, D) -> (16, tm).
    # Keeps batch on the lane axis for everything downstream.  [MXU, f32 accumulate]
    h1 = jax.lax.dot_general(
        w1_ref[...], x,
        dimension_numbers=(((1,), (1,)), ((), ())),
        preferred_element_type=jnp.float32,
    ) + b1_ref[...]
    h1 = jnp.maximum(h1, 0.0)                                        # ReLU (VPU)

    # Layer 2: (8, 16) @ (16, tm) -> (8, tm)   [MXU]
    h2 = jnp.dot(w2_ref[...], h1, preferred_element_type=jnp.float32) + b2_ref[...]
    h2 = jnp.maximum(h2, 0.0)                                        # ReLU (VPU)

    # Layer 3 (8 -> 1): broadcast-multiply + sublane reduce (VPU/XLU) instead of an
    # N=1 MXU matmul; b3 is a scalar read from SMEM.
    z = jnp.sum(w3_ref[...] * h2, axis=0, keepdims=True) + b3_ref[0]    # (1, tm)

    o_ref[...] = jax.nn.sigmoid(z).astype(o_ref.dtype)               # stable sigmoid (EUP)


def _pick_batch_tile(batch, in_features, *, vmem_budget_bytes=24 << 20, max_tm=8192):
    """Derive the batch tile from the VMEM budget (per review).

    Per-row footprint: double-buffered x tile (2*D*4 B), double-buffered output
    (2*4 B) and f32 intermediates h1/h2/z (~2*25*4 B including temporaries).
    """
    per_row_bytes = 4 * (2 * in_features + 2 + 2 * 25)
    tm = min(max_tm, vmem_budget_bytes // per_row_bytes)
    # v7x has 2 TensorCores: keep >= 2 grid steps when the batch is large enough
    # so the "parallel" batch axis can be split across both cores.
    if batch > 2 * 256:
        tm = min(tm, pl.cdiv(pl.cdiv(batch, 2), 256) * 256)
    # Never allocate a tile (much) larger than the batch itself.
    tm = min(tm, pl.cdiv(batch, 256) * 256)
    # Lane-axis extent: multiple of 256 fills the v6e/v7x MXU and satisfies the
    # (8, 128) block constraint.
    tm = max(256, (tm // 256) * 256)
    return tm


def binary_classification_forward(x, params, *, tm=None, use_bf16=False):
    """x: (B, D) float32.  params: PyTorch-convention weights (out, in) + 1-D biases.

    Returns (B, 1) float32 probabilities, matching BinaryClassification.forward
    in eval mode.
    """
    B, D = x.shape
    if tm is None:
        tm = _pick_batch_tile(B, D)
    num_tiles = pl.cdiv(B, tm)

    w1 = params["w1"]                                  # (16, D)
    b1 = params["b1"].reshape(16, 1)
    w2 = params["w2"]                                  # (8, 16)
    b2 = params["b2"].reshape(8, 1)
    w3 = params["w3"].reshape(8, 1)                    # (1, 8) -> (8, 1)
    b3 = params["b3"].reshape(1)                       # scalar, lives in SMEM

    if use_bf16:
        # Halves the HBM read of x (the whole roofline); breaks 1e-5 f32 parity.
        x = x.astype(jnp.bfloat16)
        w1 = w1.astype(jnp.bfloat16)

    const2 = lambda i: (0, 0)                          # weights stay VMEM-resident

    weight_elems = 16 * D + 16 + 8 * 16 + 8 + 8 + 1
    cost = pl.CostEstimate(
        flops=2 * B * (16 * D + 16 * 8 + 8),
        transcendentals=B,
        bytes_accessed=B * D * x.dtype.itemsize + B * 4 + 4 * weight_elems,
    )

    out = pl.pallas_call(
        _mlp_kernel,
        out_shape=jax.ShapeDtypeStruct((1, B), jnp.float32),
        grid=(num_tiles,),
        in_specs=[
            pl.BlockSpec((tm, D), lambda i: (i, 0)),   # contiguous (tm, D) x tiles
            pl.BlockSpec((16, D), const2),
            pl.BlockSpec((16, 1), const2),
            pl.BlockSpec((8, 16), const2),
            pl.BlockSpec((8, 1), const2),
            pl.BlockSpec((8, 1), const2),
            pl.BlockSpec(memory_space=pltpu.MemorySpace.SMEM),   # b3 scalar
        ],
        out_specs=pl.BlockSpec((1, tm), lambda i: (0, i)),       # lane-dense output slab
        compiler_params=pltpu.CompilerParams(
            dimension_semantics=("parallel",),          # megacore sharding on v7x
            vmem_limit_bytes=32 << 20,                  # > v5e 16 MiB default, < v7x 64 MiB
        ),
        cost_estimate=cost,
    )(x, w1, b1, w2, b2, w3, b3)

    return out.reshape(B, 1)                            # free reshape of (1, B)


def init_params(input_size, key):
    """Deterministic synthetic init matching shapes of buildNetwork([D,16,8,1]).

    Weights are stored in PyTorch nn.Linear convention: (out_features, in_features).
    """
    k1, k2, k3, k4, k5, k6 = jax.random.split(key, 6)

    def uniform(k, shape, fan_in):
        bound = 1.0 / jnp.sqrt(fan_in)
        return jax.random.uniform(k, shape, jnp.float32, -bound, bound)

    return {
        "w1": uniform(k1, (16, input_size), input_size),
        "b1": uniform(k2, (16,), input_size),
        "w2": uniform(k3, (8, 16), 16),
        "b2": uniform(k4, (8,), 16),
        "w3": uniform(k5, (1, 8), 8),
        "b3": uniform(k6, (1,), 8),
    }


def _reference_forward(x, p):
    h1 = jnp.maximum(x @ p["w1"].T + p["b1"], 0.0)
    h2 = jnp.maximum(h1 @ p["w2"].T + p["b2"], 0.0)
    return jax.nn.sigmoid(h2 @ p["w3"].T + p["b3"])


if __name__ == "__main__":
    key = jax.random.PRNGKey(0)
    k_x, k_p = jax.random.split(key)

    # Small but non-trivial: batch=600 -> tm=512, 2 grid steps with a ragged
    # last tile, exercising tiling, partial-block masking and the parallel axis.
    batch, input_size = 600, 32
    x = jax.random.normal(k_x, (batch, input_size), dtype=jnp.float32)
    params = init_params(input_size, k_p)

    out = binary_classification_forward(x, params)
    out = jax.block_until_ready(out)

    ref = _reference_forward(x, params)
    assert out.shape == (batch, 1)
    assert jnp.allclose(out, ref, atol=1e-5, rtol=1e-5)

    print("KERNEL_OK")
</pallas_src>

<mosaic_0001>
module attributes {stable_mosaic.version = 11 : i64} {
  func.func @_mlp_kernel(%arg0: i32, %arg1: memref<512x32xf32, #tpu.memory_space<vmem>>, %arg2: memref<16x32xf32, #tpu.memory_space<vmem>>, %arg3: memref<16x1xf32, #tpu.memory_space<vmem>>, %arg4: memref<8x16xf32, #tpu.memory_space<vmem>>, %arg5: memref<8x1xf32, #tpu.memory_space<vmem>>, %arg6: memref<8x1xf32, #tpu.memory_space<vmem>>, %arg7: memref<1xf32, #tpu.memory_space<smem>>, %arg8: memref<1x512xf32, #tpu.memory_space<vmem>>) attributes {dimension_semantics = [#tpu.dimension_semantics<parallel>], iteration_bounds = array<i64: 2>, scalar_prefetch = 0 : i64, scratch_operands = 0 : i64, tpu.core_type = #tpu.core_type<tc>, window_params = [{transform_indices = @transform_0, window_bounds = array<i64: 512, 32>}, {pipeline_mode = #tpu.pipeline_mode<synchronous>, transform_indices = @transform_1, window_bounds = array<i64: 16, 32>}, {pipeline_mode = #tpu.pipeline_mode<synchronous>, transform_indices = @transform_2, window_bounds = array<i64: 16, 1>}, {pipeline_mode = #tpu.pipeline_mode<synchronous>, transform_indices = @transform_3, window_bounds = array<i64: 8, 16>}, {pipeline_mode = #tpu.pipeline_mode<synchronous>, transform_indices = @transform_4, window_bounds = array<i64: 8, 1>}, {pipeline_mode = #tpu.pipeline_mode<synchronous>, transform_indices = @transform_5, window_bounds = array<i64: 8, 1>}, {transform_indices = @transform_6, window_bounds = array<i64: 1>}, {transform_indices = @transform_7, window_bounds = array<i64: 1, 512>}]} {
    %c0 = arith.constant 0 : index
    %c0_0 = arith.constant 0 : index
    %0 = vector.load %arg1[%c0, %c0_0] : memref<512x32xf32, #tpu.memory_space<vmem>>, vector<512x32xf32>
    %c0_1 = arith.constant 0 : index
    %c0_2 = arith.constant 0 : index
    %1 = vector.load %arg2[%c0_1, %c0_2] : memref<16x32xf32, #tpu.memory_space<vmem>>, vector<16x32xf32>
    %cst = arith.constant dense<0.000000e+00> : vector<16x512xf32>
    %2 = tpu.matmul %1, %0, %cst {dimension_numbers = #tpu.dot_dimension_numbers<[1], [1], [0], [0], [0, 0, 1, 0], [], []>} : vector<16x32xf32>, vector<512x32xf32>, vector<16x512xf32> -> vector<16x512xf32>
    %c0_3 = arith.constant 0 : index
    %c0_4 = arith.constant 0 : index
    %3 = vector.load %arg3[%c0_3, %c0_4] : memref<16x1xf32, #tpu.memory_space<vmem>>, vector<16x1xf32>
    %4 = vector.broadcast %3 : vector<16x1xf32> to vector<16x512xf32>
    %5 = arith.addf %2, %4 : vector<16x512xf32>
    %cst_5 = arith.constant 0.000000e+00 : f32
    %6 = vector.broadcast %cst_5 : f32 to vector<16x512xf32>
    %7 = arith.maximumf %5, %6 : vector<16x512xf32>
    %c0_6 = arith.constant 0 : index
    %c0_7 = arith.constant 0 : index
    %8 = vector.load %arg4[%c0_6, %c0_7] : memref<8x16xf32, #tpu.memory_space<vmem>>, vector<8x16xf32>
    %cst_8 = arith.constant dense<0.000000e+00> : vector<8x512xf32>
    %9 = tpu.matmul %8, %7, %cst_8 {dimension_numbers = #tpu.dot_dimension_numbers<[1], [0], [0], [1], [0, 0, 1, 1], [], []>} : vector<8x16xf32>, vector<16x512xf32>, vector<8x512xf32> -> vector<8x512xf32>
    %c0_9 = arith.constant 0 : index
    %c0_10 = arith.constant 0 : index
    %10 = vector.load %arg5[%c0_9, %c0_10] : memref<8x1xf32, #tpu.memory_space<vmem>>, vector<8x1xf32>
    %11 = vector.broadcast %10 : vector<8x1xf32> to vector<8x512xf32>
    %12 = arith.addf %9, %11 : vector<8x512xf32>
    %cst_11 = arith.constant 0.000000e+00 : f32
    %13 = vector.broadcast %cst_11 : f32 to vector<8x512xf32>
    %14 = arith.maximumf %12, %13 : vector<8x512xf32>
    %c0_12 = arith.constant 0 : index
    %c0_13 = arith.constant 0 : index
    %15 = vector.load %arg6[%c0_12, %c0_13] : memref<8x1xf32, #tpu.memory_space<vmem>>, vector<8x1xf32>
    %16 = vector.broadcast %15 : vector<8x1xf32> to vector<8x512xf32>
    %17 = arith.mulf %16, %14 : vector<8x512xf32>
    %cst_14 = arith.constant dense<0.000000e+00> : vector<512xf32>
    %18 = vector.multi_reduction <add>, %17, %cst_14 [0] : vector<8x512xf32> to vector<512xf32>
    %19 = vector.shape_cast %18 : vector<512xf32> to vector<1x512xf32>
    %c0_15 = arith.constant 0 : index
    %20 = memref.load %arg7[%c0_15] : memref<1xf32, #tpu.memory_space<smem>>
    %21 = vector.broadcast %20 : f32 to vector<1x512xf32>
    %22 = arith.addf %19, %21 : vector<1x512xf32>
    %23 = arith.negf %22 : vector<1x512xf32>
    %24 = math.exp %23 : vector<1x512xf32>
    %cst_16 = arith.constant 1.000000e+00 : f32
    %25 = vector.broadcast %cst_16 : f32 to vector<1x512xf32>
    %26 = arith.addf %25, %24 : vector<1x512xf32>
    %27 = arith.divf %25, %26 : vector<1x512xf32>
    %c0_17 = arith.constant 0 : index
    %c0_18 = arith.constant 0 : index
    %28 = vector.load %arg8[%c0_17, %c0_18] : memref<1x512xf32, #tpu.memory_space<vmem>>, vector<1x512xf32>
    tpu.vector_store %arg8[%c0_17, %c0_18], %27 {strides = array<i32>} : memref<1x512xf32, #tpu.memory_space<vmem>>, vector<1x512xf32>,
    return
  }
  func.func @transform_0(%arg0: i32) -> (i32, i32) {
    %c0_i32 = arith.constant 0 : i32
    %c0_i32_0 = arith.constant 0 : i32
    return %arg0, %c0_i32 : i32, i32
  }
  func.func @transform_1(%arg0: i32) -> (i32, i32) {
    %c0_i32 = arith.constant 0 : i32
    %c0_i32_0 = arith.constant 0 : i32
    %c0_i32_1 = arith.constant 0 : i32
    return %c0_i32, %c0_i32_0 : i32, i32
  }
  func.func @transform_2(%arg0: i32) -> (i32, i32) {
    %c0_i32 = arith.constant 0 : i32
    %c0_i32_0 = arith.constant 0 : i32
    %c0_i32_1 = arith.constant 0 : i32
    return %c0_i32, %c0_i32_0 : i32, i32
  }
  func.func @transform_3(%arg0: i32) -> (i32, i32) {
    %c0_i32 = arith.constant 0 : i32
    %c0_i32_0 = arith.constant 0 : i32
    %c0_i32_1 = arith.constant 0 : i32
    return %c0_i32, %c0_i32_0 : i32, i32
  }
  func.func @transform_4(%arg0: i32) -> (i32, i32) {
    %c0_i32 = arith.constant 0 : i32
    %c0_i32_0 = arith.constant 0 : i32
    %c0_i32_1 = arith.constant 0 : i32
    return %c0_i32, %c0_i32_0 : i32, i32
  }
  func.func @transform_5(%arg0: i32) -> (i32, i32) {
    %c0_i32 = arith.constant 0 : i32
    %c0_i32_0 = arith.constant 0 : i32
    %c0_i32_1 = arith.constant 0 : i32
    return %c0_i32, %c0_i32_0 : i32, i32
  }
  func.func @transform_6(%arg0: i32) -> i32 {
    %c0_i32 = arith.constant 0 : i32
    %c0_i32_0 = arith.constant 0 : i32
    return %c0_i32 : i32
  }
  func.func @transform_7(%arg0: i32) -> (i32, i32) {
    %c0_i32 = arith.constant 0 : i32
    %c0_i32_0 = arith.constant 0 : i32
    return %c0_i32, %arg0 : i32, i32
  }
}

</mosaic_0001>

<llo_original>
// kernel: tpu_custom_call.1
$region0: #{tpu_custom_call.1}
  #allocation0 [shape = 'u32[]', space=smem, size = 0x4, offset = 0x4, fixed_abs, tag = 'smem constant byte address 0x4 - core index']
  #allocation1 [shape = 'u32[144,128]{1,0:T(1,128)}', space=vmem, size = 0x12000, scoped, tag = 'internal scratch']
  #allocation2 [shape = 'f32[1]{0:T(128)S(6)}', space=smem, size = 0x200, scoped, tag = 'scoped memory for tpu_custom_call.1']
  %s0 = inlined_call_operand.vmem [shape: f32[600,32], index: 0, kind: input, shape index: {}]
  %s1 = inlined_call_operand.vmem [shape: f32[16,32], index: 1, kind: input, shape index: {}]
  %s2 = inlined_call_operand.vmem [shape: f32[16,1], index: 2, kind: input, shape index: {}]
  %s3 = inlined_call_operand.vmem [shape: f32[8,16], index: 3, kind: input, shape index: {}]
  %s4 = inlined_call_operand.vmem [shape: f32[8,1], index: 4, kind: input, shape index: {}]
  %s5 = inlined_call_operand.vmem [shape: f32[8,1], index: 5, kind: input, shape index: {}]
  %s6 = inlined_call_operand.<no memory space> [shape: f32[1], index: 6, kind: input, shape index: {}]
  %s7 = inlined_call_operand.hbm [shape: f32[1,600], index: 7, kind: output, shape index: {}]
  %s8 = sld [smem:[#allocation0]]
  $region61: #{tpu_custom_call.1} parent=0
    _
  %s10 = ssub.s32 1, %s8
  %s11 = scalar_select 0, %s10, %s8
  %12 = sst [smem:[#allocation2]] %s6
  $region1: #{tpu_custom_call.1} parent=0
    #allocation3 [shape = 'u8[4096]{0}', space=vmem, size = 0x1000, scoped, tag = 'output window, operand 0']
    #allocation4 [shape = 's32[2]{0}', space=sflag, size = 0x8, scoped, tag = 'scoped memory for tpu_custom_call.1']
    %13 = vsyncpa [#allocation4], 0
    %s14 = scalar_lea.sflag [#allocation4], 1
    %15 = vsyncpa %s14, 0
    loop: start=0, step=1, limit=4
    $region2: #{tpu_custom_call.1} parent=1 // loop_pre_header
      _
    $region3: #{tpu_custom_call.1} parent=1 // loop_header
      %s17 = sphi 0, %s21
      %p18 = scmp.ge.s32.totalorder %s17, 4
      %s27 = sphi 0, %s29
      %s30 = sphi 0, %s27
      %s31 = sphi 0, %s30
      %s47 = sphi 0, %s31
      %s51 = sphi 0, %s51
      %s53 = sphi 0, %s51
      %s54 = sphi 0, %s53
      %s68 = sphi 0, %s54
      %s72 = sphi 0, %s72
      %s74 = sphi 0, %s72
      %s75 = sphi 0, %s74
      %s89 = sphi 0, %s75
      %s93 = sphi 0, %s93
      %s95 = sphi 0, %s93
      %s96 = sphi 0, %s95
      %s110 = sphi 0, %s96
      %s114 = sphi 0, %s114
      %s116 = sphi 0, %s114
      %s117 = sphi 0, %s116
      %s131 = sphi 0, %s117
      %s135 = sphi 0, %s135
      %s137 = sphi 0, %s135
      %s138 = sphi 0, %s137
      %s152 = sphi 0, %s138
      %s156 = sphi 0, %s156
      %s158 = sphi 0, %s156
      %s159 = sphi 0, %s158
      %s173 = sphi 0, %s159
      %s179 = sphi 0, %s181
      %s182 = sphi 0, %s179
      %s183 = sphi 0, %s182
      %s199 = sphi 0, %s183
    $region4: #{tpu_custom_call.1} parent=1 // loop_header_branch
      %20 = sbr.rel (%p18) target = $region8
    $region5: #{tpu_custom_call.1} parent=1 // loop_body
      %s22 = ssub.s32 %s17, 1
      %s23 = ssub.s32 %s17, 2
      %s24 = sadd.s32 %s17, 1
      %s25 = ssub.s32 %s17, %s24
      %p26 = scmp.eq.s32.totalorder %s25, 0
      %s28 = sadd.s32 %s27, 1
      %s29 = scalar_select %p26, %s27, %s28
      %p32 = pneg %p26
      %p33 = scmp.eq.s32.totalorder %s17, 1
      %p34 = por %p32, %p33
      %p35 = scmp.ne.s32.totalorder %s27, %s30
      %p36 = scmp.eq.s32.totalorder %s17, 0
      %p37 = por %p35, %p36
      %p38 = scmp.ne.s32.totalorder %s27, %s30
      %p39 = scmp.eq.s32.totalorder %s22, 1
      %p40 = por %p38, %p39
      %p41 = scmp.ne.s32.totalorder %s30, %s31
      %p42 = scmp.eq.s32.totalorder %s22, 0
      %p43 = por %p41, %p42
      %p44 = scmp.ne.s32.totalorder %s30, %s31
      %p45 = scmp.eq.s32.totalorder %s23, 1
      %p46 = por %p44, %p45
      %p48 = scmp.ne.s32.totalorder %s31, %s47
      %p49 = scmp.eq.s32.totalorder %s23, 0
      %p50 = por %p48, %p49
      %s52 = sadd.s32 %s51, 1
      %p55 = scmp.eq.s32.totalorder %s17, 1
      %p56 = scmp.ne.s32.totalorder %s51, %s53
      %p57 = scmp.eq.s32.totalorder %s17, 0
      %p58 = por %p56, %p57
      %p59 = scmp.ne.s32.totalorder %s51, %s53
      %p60 = scmp.eq.s32.totalorder %s22, 1
      %p61 = por %p59, %p60
      %p62 = scmp.ne.s32.totalorder %s53, %s54
      %p63 = scmp.eq.s32.totalorder %s22, 0
      %p64 = por %p62, %p63
      %p65 = scmp.ne.s32.totalorder %s53, %s54
      %p66 = scmp.eq.s32.totalorder %s23, 1
      %p67 = por %p65, %p66
      %p69 = scmp.ne.s32.totalorder %s54, %s68
      %p70 = scmp.eq.s32.totalorder %s23, 0
      %p71 = por %p69, %p70
      %s73 = sadd.s32 %s72, 1
      %p76 = scmp.eq.s32.totalorder %s17, 1
      %p77 = scmp.ne.s32.totalorder %s72, %s74
      %p78 = scmp.eq.s32.totalorder %s17, 0
      %p79 = por %p77, %p78
      %p80 = scmp.ne.s32.totalorder %s72, %s74
      %p81 = scmp.eq.s32.totalorder %s22, 1
      %p82 = por %p80, %p81
      %p83 = scmp.ne.s32.totalorder %s74, %s75
      %p84 = scmp.eq.s32.totalorder %s22, 0
      %p85 = por %p83, %p84
      %p86 = scmp.ne.s32.totalorder %s74, %s75
      %p87 = scmp.eq.s32.totalorder %s23, 1
      %p88 = por %p86, %p87
      %p90 = scmp.ne.s32.totalorder %s75, %s89
      %p91 = scmp.eq.s32.totalorder %s23, 0
      %p92 = por %p90, %p91
      %s94 = sadd.s32 %s93, 1
      %p97 = scmp.eq.s32.totalorder %s17, 1
      %p98 = scmp.ne.s32.totalorder %s93, %s95
      %p99 = scmp.eq.s32.totalorder %s17, 0
      %p100 = por %p98, %p99
      %p101 = scmp.ne.s32.totalorder %s93, %s95
      %p102 = scmp.eq.s32.totalorder %s22, 1
      %p103 = por %p101, %p102
      %p104 = scmp.ne.s32.totalorder %s95, %s96
      %p105 = scmp.eq.s32.totalorder %s22, 0
      %p106 = por %p104, %p105
      %p107 = scmp.ne.s32.totalorder %s95, %s96
      %p108 = scmp.eq.s32.totalorder %s23, 1
      %p109 = por %p107, %p108
      %p111 = scmp.ne.s32.totalorder %s96, %s110
      %p112 = scmp.eq.s32.totalorder %s23, 0
      %p113 = por %p111, %p112
      %s115 = sadd.s32 %s114, 1
      %p118 = scmp.eq.s32.totalorder %s17, 1
      %p119 = scmp.ne.s32.totalorder %s114, %s116
      %p120 = scmp.eq.s32.totalorder %s17, 0
      %p121 = por %p119, %p120
      %p122 = scmp.ne.s32.totalorder %s114, %s116
      %p123 = scmp.eq.s32.totalorder %s22, 1
      %p124 = por %p122, %p123
      %p125 = scmp.ne.s32.totalorder %s116, %s117
      %p126 = scmp.eq.s32.totalorder %s22, 0
      %p127 = por %p125, %p126
      %p128 = scmp.ne.s32.totalorder %s116, %s117
      %p129 = scmp.eq.s32.totalorder %s23, 1
      %p130 = por %p128, %p129
      %p132 = scmp.ne.s32.totalorder %s117, %s131
      %p133 = scmp.eq.s32.totalorder %s23, 0
      %p134 = por %p132, %p133
      %s136 = sadd.s32 %s135, 1
      %p139 = scmp.eq.s32.totalorder %s17, 1
      %p140 = scmp.ne.s32.totalorder %s135, %s137
      %p141 = scmp.eq.s32.totalorder %s17, 0
      %p142 = por %p140, %p141
      %p143 = scmp.ne.s32.totalorder %s135, %s137
      %p144 = scmp.eq.s32.totalorder %s22, 1
      %p145 = por %p143, %p144
      %p146 = scmp.ne.s32.totalorder %s137, %s138
      %p147 = scmp.eq.s32.totalorder %s22, 0
      %p148 = por %p146, %p147
      %p149 = scmp.ne.s32.totalorder %s137, %s138
      %p150 = scmp.eq.s32.totalorder %s23, 1
      %p151 = por %p149, %p150
      %p153 = scmp.ne.s32.totalorder %s138, %s152
      %p154 = scmp.eq.s32.totalorder %s23, 0
      %p155 = por %p153, %p154
      %s157 = sadd.s32 %s156, 1
      %p160 = scmp.eq.s32.totalorder %s17, 1
      %p161 = scmp.ne.s32.totalorder %s156, %s158
      %p162 = scmp.eq.s32.totalorder %s17, 0
      %p163 = por %p161, %p162
      %p164 = scmp.ne.s32.totalorder %s156, %s158
      %p165 = scmp.eq.s32.totalorder %s22, 1
      %p166 = por %p164, %p165
      %p167 = scmp.ne.s32.totalorder %s158, %s159
      %p168 = scmp.eq.s32.totalorder %s22, 0
      %p169 = por %p167, %p168
      %p170 = scmp.ne.s32.totalorder %s158, %s159
      %p171 = scmp.eq.s32.totalorder %s23, 1
      %p172 = por %p170, %p171
      %p174 = scmp.ne.s32.totalorder %s159, %s173
      %p175 = scmp.eq.s32.totalorder %s23, 0
      %p176 = por %p174, %p175
      %s177 = ssub.s32 %s17, %s24
      %p178 = scmp.eq.s32.totalorder %s177, 0
      %s180 = sadd.s32 %s179, 1
      %s181 = scalar_select %p178, %s179, %s180
      %p184 = pneg %p178
      %p185 = scmp.eq.s32.totalorder %s17, 1
      %p186 = por %p184, %p185
      %p187 = scmp.ne.s32.totalorder %s179, %s182
      %p188 = scmp.eq.s32.totalorder %s17, 0
      %p189 = por %p187, %p188
      %p190 = scmp.ne.s32.totalorder %s179, %s182
      %p191 = scmp.eq.s32.totalorder %s22, 1
      %p192 = por %p190, %p191
      %p193 = scmp.ne.s32.totalorder %s182, %s183
      %p194 = scmp.eq.s32.totalorder %s22, 0
      %p195 = por %p193, %p194
      %p196 = scmp.ne.s32.totalorder %s182, %s183
      %p197 = scmp.eq.s32.totalorder %s23, 1
      %p198 = por %p196, %p197
      %p200 = scmp.ne.s32.totalorder %s183, %s199
      %p201 = scmp.eq.s32.totalorder %s23, 0
      %p202 = por %p200, %p201
      %p203 = scmp.le.s32.totalorder 1, %s17
      %p204 = scmp.lt.s32.totalorder %s17, 3
      %p205 = pnand %p203, %p204
      %p206 = pneg %p205
      // Predicated region
      $region9: #{tpu_custom_call.1} parent=5 // pred_check
        _
      $region10: #{tpu_custom_call.1} parent=5 // pred_check_branch
        %208 = sbr.rel (%p205) target = $region12
      $region11: #{tpu_custom_call.1} parent=5 // pred_region
        %s209 = ssub.s32 %s17, 1
        // Predicated region
        $region13: #{tpu_custom_call.1} parent=11 // pred_check
          %p210 = pneg %p64
        $region14: #{tpu_custom_call.1} parent=11 // pred_check_branch
          %212 = sbr.rel (%p210) target = $region16
        $region15: #{tpu_custom_call.1} parent=11 // pred_region
          _
        $region16: #{tpu_custom_call.1} parent=11 // pred_fallthru
          _
        // Predicated region
        $region17: #{tpu_custom_call.1} parent=11 // pred_check
          %p213 = pneg %p85
        $region18: #{tpu_custom_call.1} parent=11 // pred_check_branch
          %215 = sbr.rel (%p213) target = $region20
        $region19: #{tpu_custom_call.1} parent=11 // pred_region
          _
        $region20: #{tpu_custom_call.1} parent=11 // pred_fallthru
          _
        // Predicated region
        $region21: #{tpu_custom_call.1} parent=11 // pred_check
          %p216 = pneg %p106
        $region22: #{tpu_custom_call.1} parent=11 // pred_check_branch
          %218 = sbr.rel (%p216) target = $region24
        $region23: #{tpu_custom_call.1} parent=11 // pred_region
          _
        $region24: #{tpu_custom_call.1} parent=11 // pred_fallthru
          _
        // Predicated region
        $region25: #{tpu_custom_call.1} parent=11 // pred_check
          %p219 = pneg %p127
        $region26: #{tpu_custom_call.1} parent=11 // pred_check_branch
          %221 = sbr.rel (%p219) target = $region28
        $region27: #{tpu_custom_call.1} parent=11 // pred_region
          _
        $region28: #{tpu_custom_call.1} parent=11 // pred_fallthru
          _
        // Predicated region
        $region29: #{tpu_custom_call.1} parent=11 // pred_check
          %p222 = pneg %p148
        $region30: #{tpu_custom_call.1} parent=11 // pred_check_branch
          %224 = sbr.rel (%p222) target = $region32
        $region31: #{tpu_custom_call.1} parent=11 // pred_region
          _
        $region32: #{tpu_custom_call.1} parent=11 // pred_fallthru
          _
        // Predicated region
        $region33: #{tpu_custom_call.1} parent=11 // pred_check
          %p225 = pneg %p169
        $region34: #{tpu_custom_call.1} parent=11 // pred_check_branch
          %227 = sbr.rel (%p225) target = $region36
        $region35: #{tpu_custom_call.1} parent=11 // pred_region
          _
        $region36: #{tpu_custom_call.1} parent=11 // pred_fallthru
          _
      $region12: #{tpu_custom_call.1} parent=5 // pred_fallthru
        _
      %p228 = scmp.lt.s32.totalorder %s17, 2
      // Predicated region
      $region37: #{tpu_custom_call.1} parent=5 // pred_check
        %p229 = pneg %p228
      $region38: #{tpu_custom_call.1} parent=5 // pred_check_branch
        %231 = sbr.rel (%p229) target = $region40
      $region39: #{tpu_custom_call.1} parent=5 // pred_region
        // Predicated region
        $region41: #{tpu_custom_call.1} parent=39 // pred_check
          %p232 = pneg %p37
        $region42: #{tpu_custom_call.1} parent=39 // pred_check_branch
          %234 = sbr.rel (%p232) target = $region44
        $region43: #{tpu_custom_call.1} parent=39 // pred_region
          %s235 = smul.u32 64, %s17
          %s236 = ssub.s32 75, %s235
          %p237 = scmp.lt.s32.totalorder %s236, 64
          %s238 = scalar_select %p237, %s236, 64
          %s239 = smul.u32 128, %s238
          %p240 = scmp.lt.s32.totalorder %s235, 74
          %s241 = scalar_select %p240, %s235, 74
          %s242 = smul.addr %s241, 8
          %s243 = scalar_lea.vmem %s0, %s242
          %s244 = smul.u32 64, %s17
          %s245 = ssub.s32 75, %s244
          %p246 = scmp.lt.s32.totalorder %s245, 64
          %s247 = scalar_select %p246, %s245, 64
          %s248 = smul.u32 128, %s247
        $region44: #{tpu_custom_call.1} parent=39 // pred_fallthru
          _
      $region40: #{tpu_custom_call.1} parent=5 // pred_fallthru
        _
      %p249 = scmp.le.s32.totalorder 1, %s17
      %p250 = scmp.lt.s32.totalorder %s17, 3
      %p251 = pnand %p249, %p250
      %p252 = pneg %p251
      // Predicated region
      $region45: #{tpu_custom_call.1} parent=5 // pred_check
        _
      $region46: #{tpu_custom_call.1} parent=5 // pred_check_branch
        %254 = sbr.rel (%p251) target = $region48
      $region47: #{tpu_custom_call.1} parent=5 // pred_region
        %s255 = ssub.s32 %s17, 1
        %s256 = smul.u32 64, %s22
        %s257 = ssub.s32 75, %s256
        %p258 = scmp.lt.s32.totalorder %s257, 64
        %s259 = scalar_select %p258, %s257, 64
        %s260 = smul.u32 128, %s259
        %p261 = scmp.lt.s32.totalorder %s256, 74
        %s262 = scalar_select %p261, %s256, 74
        %s263 = smul.addr %s262, 8
        %s264 = scalar_lea.vmem %s0, %s263
        %p265 = pneg %p43
        %p266 = pneg %p40
        %p267 = pneg %p64
        %p268 = pneg %p61
        %p269 = pneg %p85
        %p270 = pneg %p82
        %p271 = pneg %p106
        %p272 = pneg %p103
        %p273 = pneg %p127
        %p274 = pneg %p124
        %p275 = pneg %p148
        %p276 = pneg %p145
        %p277 = pneg %p169
        %p278 = pneg %p166
        %p279 = pneg %p195
        %p280 = pneg %p192
        %s281 = sand.u32 %s182, 1
        %s282 = scalar_lea.sflag [#allocation4], %s281
        %s283 = sand.u32 %s182, 1
        %s284 = smul.addr %s283, 4
        %s285 = scalar_lea.vmem [#allocation3], %s284
        %s286 = smul.u32 64, %s22
        %s287 = ssub.s32 75, %s286
        %p288 = scmp.lt.s32.totalorder %s287, 64
        %s289 = scalar_select %p288, %s287, 64
        %s290 = smul.u32 128, %s289
        %p291 = scmp.lt.s32.totalorder %s286, 74
        %s292 = scalar_select %p291, %s286, 74
        %s293 = smul.addr %s292, 8
        %s294 = scalar_lea.vmem %s0, %s293
        %s295 = smul.u32 64, %s22
        %s296 = ssub.s32 75, %s295
        %p297 = scmp.lt.s32.totalorder %s296, 64
        %s298 = scalar_select %p297, %s296, 64
        %s299 = smul.u32 128, %s298
        %s300 = smul.u32 4, %s22
        %s301 = ssub.s32 5, %s300
        %p302 = scmp.lt.s32.totalorder %s301, 4
        %s303 = scalar_select %p302, %s301, 4
        %s304 = smul.u32 16, %s303
        %v305 = vld [vmem:[%s294] sm:$0xff]
        %v306 = vld [vmem:[%s294 + $0x8] sm:$0xff]
        %v307 = vld [vmem:[%s294 + $0x10] sm:$0xff]
        %v308 = vld [vmem:[%s294 + $0x18] sm:$0xff]
        %v309 = vld [vmem:[%s294 + $0x20] sm:$0xff]
        %v310 = vld [vmem:[%s294 + $0x28] sm:$0xff]
        %v311 = vld [vmem:[%s294 + $0x30] sm:$0xff]
        %v312 = vld [vmem:[%s294 + $0x38] sm:$0xff]
        %v313 = vld [vmem:[%s294 + $0x40] sm:$0xff]
        %v314 = vld [vmem:[%s294 + $0x48] sm:$0xff]
        %v315 = vld [vmem:[%s294 + $0x50] sm:$0xff]
        %v316 = vld [vmem:[%s294 + $0x58] sm:$0xff]
        %v317 = vld [vmem:[%s294 + $0x60] sm:$0xff]
        %v318 = vld [vmem:[%s294 + $0x68] sm:$0xff]
        %v319 = vld [vmem:[%s294 + $0x70] sm:$0xff]
        %v320 = vld [vmem:[%s294 + $0x78] sm:$0xff]
        %v321 = vld [vmem:[%s294 + $0x80] sm:$0xff]
        %v322 = vld [vmem:[%s294 + $0x88] sm:$0xff]
        %v323 = vld [vmem:[%s294 + $0x90] sm:$0xff]
        %v324 = vld [vmem:[%s294 + $0x98] sm:$0xff]
        %v325 = vld [vmem:[%s294 + $0xa0] sm:$0xff]
        %v326 = vld [vmem:[%s294 + $0xa8] sm:$0xff]
        %v327 = vld [vmem:[%s294 + $0xb0] sm:$0xff]
        %v328 = vld [vmem:[%s294 + $0xb8] sm:$0xff]
        %v329 = vld [vmem:[%s294 + $0xc0] sm:$0xff]
        %v330 = vld [vmem:[%s294 + $0xc8] sm:$0xff]
        %v331 = vld [vmem:[%s294 + $0xd0] sm:$0xff]
        %v332 = vld [vmem:[%s294 + $0xd8] sm:$0xff]
        %v333 = vld [vmem:[%s294 + $0xe0] sm:$0xff]
        %v334 = vld [vmem:[%s294 + $0xe8] sm:$0xff]
        %v335 = vld [vmem:[%s294 + $0xf0] sm:$0xff]
        %v336 = vld [vmem:[%s294 + $0xf8] sm:$0xff]
        %v337 = vld [vmem:[%s294 + $0x100] sm:$0xff]
        %v338 = vld [vmem:[%s294 + $0x108] sm:$0xff]
        %v339 = vld [vmem:[%s294 + $0x110] sm:$0xff]
        %v340 = vld [vmem:[%s294 + $0x118] sm:$0xff]
        %v341 = vld [vmem:[%s294 + $0x120] sm:$0xff]
        %v342 = vld [vmem:[%s294 + $0x128] sm:$0xff]
        %v343 = vld [vmem:[%s294 + $0x130] sm:$0xff]
        %v344 = vld [vmem:[%s294 + $0x138] sm:$0xff]
        %v345 = vld [vmem:[%s294 + $0x140] sm:$0xff]
        %v346 = vld [vmem:[%s294 + $0x148] sm:$0xff]
        %v347 = vld [vmem:[%s294 + $0x150] sm:$0xff]
        %v348 = vld [vmem:[%s294 + $0x158] sm:$0xff]
        %v349 = vld [vmem:[%s294 + $0x160] sm:$0xff]
        %v350 = vld [vmem:[%s294 + $0x168] sm:$0xff]
        %v351 = vld [vmem:[%s294 + $0x170] sm:$0xff]
        %v352 = vld [vmem:[%s294 + $0x178] sm:$0xff]
        %v353 = vld [vmem:[%s294 + $0x180] sm:$0xff]
        %v354 = vld [vmem:[%s294 + $0x188] sm:$0xff]
        %v355 = vld [vmem:[%s294 + $0x190] sm:$0xff]
        %v356 = vld [vmem:[%s294 + $0x198] sm:$0xff]
        %v357 = vld [vmem:[%s294 + $0x1a0] sm:$0xff]
        %v358 = vld [vmem:[%s294 + $0x1a8] sm:$0xff]
        %v359 = vld [vmem:[%s294 + $0x1b0] sm:$0xff]
        %v360 = vld [vmem:[%s294 + $0x1b8] sm:$0xff]
        %v361 = vld [vmem:[%s294 + $0x1c0] sm:$0xff]
        %v362 = vld [vmem:[%s294 + $0x1c8] sm:$0xff]
        %v363 = vld [vmem:[%s294 + $0x1d0] sm:$0xff]
        %v364 = vld [vmem:[%s294 + $0x1d8] sm:$0xff]
        %v365 = vld [vmem:[%s294 + $0x1e0] sm:$0xff]
        %v366 = vld [vmem:[%s294 + $0x1e8] sm:$0xff]
        %v367 = vld [vmem:[%s294 + $0x1f0] sm:$0xff]
        %v368 = vld [vmem:[%s294 + $0x1f8] sm:$0xff]
        %v369 = vld [vmem:[%s1] sm:$0xff]
        %v370 = vld [vmem:[%s1 + $0x8] sm:$0xff]
        %v371 = vld [vmem:[%s2] sm:$0xff]
        %v372 = vld [vmem:[%s2 + $0x8] sm:$0xff]
        %374 = vset.pattern.permute.xlu0 0
        %375 = vperm.xlu0 %374, %v371
        %v376 = vpop.permute.xlu0 %375
        %379 = vset.pattern.permute.xlu0 0
        %380 = vperm.xlu0 %379, %v372
        %v381 = vpop.permute.xlu0 %380
        %vm383 = vcmask 261120
        %v385 = vsel %vm383, %v369, 0
        %v388 = vsel %vm383, %v370, 0
        %v391 = vsel %vm383, %v305, 0
        %v394 = vsel %vm383, %v306, 0
        %v397 = vsel %vm383, %v307, 0
        %v400 = vsel %vm383, %v308, 0
        %v403 = vsel %vm383, %v309, 0
        %v406 = vsel %vm383, %v310, 0
        %v409 = vsel %vm383, %v311, 0
        %v412 = vsel %vm383, %v312, 0
        %v415 = vsel %vm383, %v313, 0
        %v418 = vsel %vm383, %v314, 0
        %v421 = vsel %vm383, %v315, 0
        %v424 = vsel %vm383, %v316, 0
        %v427 = vsel %vm383, %v317, 0
        %v430 = vsel %vm383, %v318, 0
        %v433 = vsel %vm383, %v319, 0
        %v436 = vsel %vm383, %v320, 0
        %v439 = vsel %vm383, %v321, 0
        %v442 = vsel %vm383, %v322, 0
        %v445 = vsel %vm383, %v323, 0
        %v448 = vsel %vm383, %v324, 0
        %v451 = vsel %vm383, %v325, 0
        %v454 = vsel %vm383, %v326, 0
        %v457 = vsel %vm383, %v327, 0
        %v460 = vsel %vm383, %v328, 0
        %v463 = vsel %vm383, %v329, 0
        %v466 = vsel %vm383, %v330, 0
        %v469 = vsel %vm383, %v331, 0
        %v472 = vsel %vm383, %v332, 0
        %v475 = vsel %vm383, %v333, 0
        %v478 = vsel %vm383, %v334, 0
        %v481 = vsel %vm383, %v335, 0
        %v484 = vsel %vm383, %v336, 0
        %v487 = vsel %vm383, %v337, 0
        %v490 = vsel %vm383, %v338, 0
        %v493 = vsel %vm383, %v339, 0
        %v496 = vsel %vm383, %v340, 0
        %v499 = vsel %vm383, %v341, 0
        %v502 = vsel %vm383, %v342, 0
        %v505 = vsel %vm383, %v343, 0
        %v508 = vsel %vm383, %v344, 0
        %v511 = vsel %vm383, %v345, 0
        %v514 = vsel %vm383, %v346, 0
        %v517 = vsel %vm383, %v347, 0
        %v520 = vsel %vm383, %v348, 0
        %v523 = vsel %vm383, %v349, 0
        %v526 = vsel %vm383, %v350, 0
        %v529 = vsel %vm383, %v351, 0
        %v532 = vsel %vm383, %v352, 0
        %v535 = vsel %vm383, %v353, 0
        %v538 = vsel %vm383, %v354, 0
        %v541 = vsel %vm383, %v355, 0
        %v544 = vsel %vm383, %v356, 0
        %v547 = vsel %vm383, %v357, 0
        %v550 = vsel %vm383, %v358, 0
        %v553 = vsel %vm383, %v359, 0
        %v556 = vsel %vm383, %v360, 0
        %v559 = vsel %vm383, %v361, 0
        %v562 = vsel %vm383, %v362, 0
        %v565 = vsel %vm383, %v363, 0
        %v568 = vsel %vm383, %v364, 0
        %v571 = vsel %vm383, %v365, 0
        %v574 = vsel %vm383, %v366, 0
        %v577 = vsel %vm383, %v367, 0
        %v580 = vsel %vm383, %v368, 0
        %582 = vmatprep.subr.mxu0 0.0
        %583 = vmatpush1.xpose.msra.mxu0 %v391
        %584 = vmatprep.subr.mxu0 0.0
        %585 = vmatpush1.xpose.msra.mxu0 %v394
        %586 = vmatprep.subr.mxu0 0.0
        %587 = vmatpush1.xpose.msra.mxu0 %v397
        %588 = vmatprep.subr.mxu0 0.0
        %589 = vmatpush1.xpose.msra.mxu0 %v400
        %590 = vmatprep.subr.mxu0 0.0
        %591 = vmatpush1.xpose.msra.mxu0 %v403
        %592 = vmatprep.subr.mxu0 0.0
        %593 = vmatpush1.xpose.msra.mxu0 %v406
        %594 = vmatprep.subr.mxu0 0.0
        %595 = vmatpush1.xpose.msra.mxu0 %v409
        %596 = vmatprep.subr.mxu0 0.0
        %597 = vmatpush1.xpose.msra.mxu0 %v412
        %598 = vmatprep.subr.mxu0 0.0
        %599 = vmatpush1.xpose.msra.mxu0 %v415
        %600 = vmatprep.subr.mxu0 0.0
        %601 = vmatpush1.xpose.msra.mxu0 %v418
        %602 = vmatprep.subr.mxu0 0.0
        %603 = vmatpush1.xpose.msra.mxu0 %v421
        %604 = vmatprep.subr.mxu0 0.0
        %605 = vmatpush1.xpose.msra.mxu0 %v424
        %606 = vmatprep.subr.mxu0 0.0
        %607 = vmatpush1.xpose.msra.mxu0 %v427
        %608 = vmatprep.subr.mxu0 0.0
        %609 = vmatpush1.xpose.msra.mxu0 %v430
        %610 = vmatprep.subr.mxu0 0.0
        %611 = vmatpush1.xpose.msra.mxu0 %v433
        %612 = vmatprep.subr.mxu0 0.0
        %613 = vmatpush1.xpose.msra.mxu0 %v436
        %614 = vmatprep.subr.mxu0 0.0
        %615 = vmatpush1.xpose.msra.mxu0 %v439
        %616 = vmatprep.subr.mxu0 0.0
        %617 = vmatpush1.xpose.msra.mxu0 %v442
        %618 = vmatprep.subr.mxu0 0.0
        %619 = vmatpush1.xpose.msra.mxu0 %v445
        %620 = vmatprep.subr.mxu0 0.0
        %621 = vmatpush1.xpose.msra.mxu0 %v448
        %622 = vmatprep.subr.mxu0 0.0
        %623 = vmatpush1.xpose.msra.mxu0 %v451
        %624 = vmatprep.subr.mxu0 0.0
        %625 = vmatpush1.xpose.msra.mxu0 %v454
        %626 = vmatprep.subr.mxu0 0.0
        %627 = vmatpush1.xpose.msra.mxu0 %v457
        %628 = vmatprep.subr.mxu0 0.0
        %629 = vmatpush1.xpose.msra.mxu0 %v460
        %630 = vmatprep.subr.mxu0 0.0
        %631 = vmatpush1.xpose.msra.mxu0 %v463
        %632 = vmatprep.subr.mxu0 0.0
        %633 = vmatpush1.xpose.msra.mxu0 %v466
        %634 = vmatprep.subr.mxu0 0.0
        %635 = vmatpush1.xpose.msra.mxu0 %v469
        %636 = vmatprep.subr.mxu0 0.0
        %637 = vmatpush1.xpose.msra.mxu0 %v472
        %638 = vmatprep.subr.mxu0 0.0
        %639 = vmatpush1.xpose.msra.mxu0 %v475
        %640 = vmatprep.subr.mxu0 0.0
        %641 = vmatpush1.xpose.msra.mxu0 %v478
        %642 = vmatprep.subr.mxu0 0.0
        %643 = vmatpush1.xpose.msra.mxu0 %v481
        %644 = vmatprep.subr.mxu0 0.0
        %645 = vmatpush1.xpose.msra.mxu0 %v484
        %646 = vmatprep.mubr.f32.mxu0 0.0
        %647 = vmatmul.mubr.f32.gmra.mrb[0].mxu0 %v385
        %v648 = vpop.f32.mrb[0].mxu0
        %v649 = vadd.f32 %v376, %v648
        %v650 = vpop.f32.mrb[0].mxu0
        %v651 = vadd.f32 %v376, %v650
        %652 = vmatprep.mubr.f32.mxu0 0.0
        %653 = vmatmul.mubr.f32.gmra.mrb[0].mxu0 %v388
        %v654 = vpop.f32.mrb[0].mxu0
        %v655 = vadd.f32 %v381, %v654
        %v656 = vpop.f32.mrb[0].mxu0
        %v657 = vadd.f32 %v381, %v656
        %658 = vdwg.mxu0
        %659 = vmatprep.subr.mxu0 0.0
        %660 = vmatpush1.xpose.msra.mxu0 %v487
        %661 = vmatprep.subr.mxu0 0.0
        %662 = vmatpush1.xpose.msra.mxu0 %v490
        %663 = vmatprep.subr.mxu0 0.0
        %664 = vmatpush1.xpose.msra.mxu0 %v493
        %665 = vmatprep.subr.mxu0 0.0
        %666 = vmatpush1.xpose.msra.mxu0 %v496
        %667 = vmatprep.subr.mxu0 0.0
        %668 = vmatpush1.xpose.msra.mxu0 %v499
        %669 = vmatprep.subr.mxu0 0.0
        %670 = vmatpush1.xpose.msra.mxu0 %v502
        %671 = vmatprep.subr.mxu0 0.0
        %672 = vmatpush1.xpose.msra.mxu0 %v505
        %673 = vmatprep.subr.mxu0 0.0
        %674 = vmatpush1.xpose.msra.mxu0 %v508
        %675 = vmatprep.subr.mxu0 0.0
        %676 = vmatpush1.xpose.msra.mxu0 %v511
        %677 = vmatprep.subr.mxu0 0.0
        %678 = vmatpush1.xpose.msra.mxu0 %v514
        %679 = vmatprep.subr.mxu0 0.0
        %680 = vmatpush1.xpose.msra.mxu0 %v517
        %681 = vmatprep.subr.mxu0 0.0
        %682 = vmatpush1.xpose.msra.mxu0 %v520
        %683 = vmatprep.subr.mxu0 0.0
        %684 = vmatpush1.xpose.msra.mxu0 %v523
        %685 = vmatprep.subr.mxu0 0.0
        %686 = vmatpush1.xpose.msra.mxu0 %v526
        %687 = vmatprep.subr.mxu0 0.0
        %688 = vmatpush1.xpose.msra.mxu0 %v529
        %689 = vmatprep.subr.mxu0 0.0
        %690 = vmatpush1.xpose.msra.mxu0 %v532
        %691 = vmatprep.subr.mxu0 0.0
        %692 = vmatpush1.xpose.msra.mxu0 %v535
        %693 = vmatprep.subr.mxu0 0.0
        %694 = vmatpush1.xpose.msra.mxu0 %v538
        %695 = vmatprep.subr.mxu0 0.0
        %696 = vmatpush1.xpose.msra.mxu0 %v541
        %697 = vmatprep.subr.mxu0 0.0
        %698 = vmatpush1.xpose.msra.mxu0 %v544
        %699 = vmatprep.subr.mxu0 0.0
        %700 = vmatpush1.xpose.msra.mxu0 %v547
        %701 = vmatprep.subr.mxu0 0.0
        %702 = vmatpush1.xpose.msra.mxu0 %v550
        %703 = vmatprep.subr.mxu0 0.0
        %704 = vmatpush1.xpose.msra.mxu0 %v553
        %705 = vmatprep.subr.mxu0 0.0
        %706 = vmatpush1.xpose.msra.mxu0 %v556
        %707 = vmatprep.subr.mxu0 0.0
        %708 = vmatpush1.xpose.msra.mxu0 %v559
        %709 = vmatprep.subr.mxu0 0.0
        %710 = vmatpush1.xpose.msra.mxu0 %v562
        %711 = vmatprep.subr.mxu0 0.0
        %712 = vmatpush1.xpose.msra.mxu0 %v565
        %713 = vmatprep.subr.mxu0 0.0
        %714 = vmatpush1.xpose.msra.mxu0 %v568
        %715 = vmatprep.subr.mxu0 0.0
        %716 = vmatpush1.xpose.msra.mxu0 %v571
        %717 = vmatprep.subr.mxu0 0.0
        %718 = vmatpush1.xpose.msra.mxu0 %v574
        %719 = vmatprep.subr.mxu0 0.0
        %720 = vmatpush1.xpose.msra.mxu0 %v577
        %721 = vmatprep.subr.mxu0 0.0
        %722 = vmatpush1.xpose.msra.mxu0 %v580
        %723 = vmatprep.mubr.f32.mxu0 0.0
        %724 = vmatmul.mubr.f32.gmra.mrb[0].mxu0 %v385
        %v725 = vpop.f32.mrb[0].mxu0
        %v726 = vadd.f32 %v376, %v725
        %v727 = vpop.f32.mrb[0].mxu0
        %v728 = vadd.f32 %v376, %v727
        %729 = vmatprep.mubr.f32.mxu0 0.0
        %730 = vmatmul.mubr.f32.gmra.mrb[0].mxu0 %v388
        %v731 = vpop.f32.mrb[0].mxu0
        %v732 = vadd.f32 %v381, %v731
        %v733 = vpop.f32.mrb[0].mxu0
        %v734 = vadd.f32 %v381, %v733
        %735 = vdwg.mxu0
        %v736 = vmax.f32 %v649, 0.0
        %v737 = vmax.f32 %v651, 0.0
        %v738 = vmax.f32 %v726, 0.0
        %v739 = vmax.f32 %v728, 0.0
        %v740 = vmax.f32 %v655, 0.0
        %v741 = vmax.f32 %v657, 0.0
        %v742 = vmax.f32 %v732, 0.0
        %v743 = vmax.f32 %v734, 0.0
        %v744 = vld [vmem:[%s3] sm:$0xff]
        %v745 = vld [vmem:[%s4] sm:$0xff]
        %747 = vset.pattern.permute.xlu0 0
        %748 = vperm.xlu0 %747, %v745
        %v749 = vpop.permute.xlu0 %748
        %vm751 = vcmask 130048
        %v753 = vsel %vm751, %v744, 0
        %755 = vmatprep.subr.mxu0 %v737
        %756 = vmatpush1.msra.mxu0 %v736
        %757 = vmatprep.subr.mxu0 %v741
        %758 = vmatpush1.msra.mxu0 %v740
        %759 = vmatprep.subr.mxu0 0.0
        %760 = vmatpush1.msra.mxu0 0.0
        %761 = vmatprep.subr.mxu0 0.0
        %762 = vmatpush1.msra.mxu0 0.0
        %763 = vmatprep.subr.mxu0 0.0
        %764 = vmatpush1.msra.mxu0 0.0
        %765 = vmatprep.subr.mxu0 0.0
        %766 = vmatpush1.msra.mxu0 0.0
        %767 = vmatprep.subr.mxu0 0.0
        %768 = vmatpush1.msra.mxu0 0.0
        %769 = vmatprep.subr.mxu0 0.0
        %770 = vmatpush1.msra.mxu0 0.0
        %771 = vmatprep.subr.mxu0 0.0
        %772 = vmatpush1.msra.mxu0 0.0
        %773 = vmatprep.subr.mxu0 0.0
        %774 = vmatpush1.msra.mxu0 0.0
        %775 = vmatprep.subr.mxu0 0.0
        %776 = vmatpush1.msra.mxu0 0.0
        %777 = vmatprep.subr.mxu0 0.0
        %778 = vmatpush1.msra.mxu0 0.0
        %779 = vmatprep.subr.mxu0 0.0
        %780 = vmatpush1.msra.mxu0 0.0
        %781 = vmatprep.subr.mxu0 0.0
        %782 = vmatpush1.msra.mxu0 0.0
        %783 = vmatprep.subr.mxu0 0.0
        %784 = vmatpush1.msra.mxu0 0.0
        %785 = vmatprep.subr.mxu0 0.0
        %786 = vmatpush1.msra.mxu0 0.0
        %787 = vmatprep.subr.mxu0 0.0
        %788 = vmatpush1.msra.mxu0 0.0
        %789 = vmatprep.subr.mxu0 0.0
        %790 = vmatpush1.msra.mxu0 0.0
        %791 = vmatprep.subr.mxu0 0.0
        %792 = vmatpush1.msra.mxu0 0.0
        %793 = vmatprep.subr.mxu0 0.0
        %794 = vmatpush1.msra.mxu0 0.0
        %795 = vmatprep.subr.mxu0 0.0
        %796 = vmatpush1.msra.mxu0 0.0
        %797 = vmatprep.subr.mxu0 0.0
        %798 = vmatpush1.msra.mxu0 0.0
        %799 = vmatprep.subr.mxu0 0.0
        %800 = vmatpush1.msra.mxu0 0.0
        %801 = vmatprep.subr.mxu0 0.0
        %802 = vmatpush1.msra.mxu0 0.0
        %803 = vmatprep.subr.mxu0 0.0
        %804 = vmatpush1.msra.mxu0 0.0
        %805 = vmatprep.subr.mxu0 0.0
        %806 = vmatpush1.msra.mxu0 0.0
        %807 = vmatprep.subr.mxu0 0.0
        %808 = vmatpush1.msra.mxu0 0.0
        %809 = vmatprep.subr.mxu0 0.0
        %810 = vmatpush1.msra.mxu0 0.0
        %811 = vmatprep.subr.mxu0 0.0
        %812 = vmatpush1.msra.mxu0 0.0
        %813 = vmatprep.subr.mxu0 0.0
        %814 = vmatpush1.msra.mxu0 0.0
        %815 = vmatprep.subr.mxu0 0.0
        %816 = vmatpush1.msra.mxu0 0.0
        %817 = vmatprep.subr.mxu0 0.0
        %818 = vmatpush1.msra.mxu0 0.0
        %819 = vmatprep.mubr.f32.mxu0 0.0
        %820 = vmatmul.mubr.f32.gmra.mrb[0].mxu0 %v753
        %v821 = vpop.f32.mrb[0].mxu0
        %v822 = vadd.f32 %v749, %v821
        %v823 = vpop.f32.mrb[0].mxu0
        %v824 = vadd.f32 %v749, %v823
        %825 = vdwg.mxu0
        %826 = vmatprep.subr.mxu0 %v739
        %827 = vmatpush1.msra.mxu0 %v738
        %828 = vmatprep.subr.mxu0 %v743
        %829 = vmatpush1.msra.mxu0 %v742
        %830 = vmatprep.subr.mxu0 0.0
        %831 = vmatpush1.msra.mxu0 0.0
        %832 = vmatprep.subr.mxu0 0.0
        %833 = vmatpush1.msra.mxu0 0.0
        %834 = vmatprep.subr.mxu0 0.0
        %835 = vmatpush1.msra.mxu0 0.0
        %836 = vmatprep.subr.mxu0 0.0
        %837 = vmatpush1.msra.mxu0 0.0
        %838 = vmatprep.subr.mxu0 0.0
        %839 = vmatpush1.msra.mxu0 0.0
        %840 = vmatprep.subr.mxu0 0.0
        %841 = vmatpush1.msra.mxu0 0.0
        %842 = vmatprep.subr.mxu0 0.0
        %843 = vmatpush1.msra.mxu0 0.0
        %844 = vmatprep.subr.mxu0 0.0
        %845 = vmatpush1.msra.mxu0 0.0
        %846 = vmatprep.subr.mxu0 0.0
        %847 = vmatpush1.msra.mxu0 0.0
        %848 = vmatprep.subr.mxu0 0.0
        %849 = vmatpush1.msra.mxu0 0.0
        %850 = vmatprep.subr.mxu0 0.0
        %851 = vmatpush1.msra.mxu0 0.0
        %852 = vmatprep.subr.mxu0 0.0
        %853 = vmatpush1.msra.mxu0 0.0
        %854 = vmatprep.subr.mxu0 0.0
        %855 = vmatpush1.msra.mxu0 0.0
        %856 = vmatprep.subr.mxu0 0.0
        %857 = vmatpush1.msra.mxu0 0.0
        %858 = vmatprep.subr.mxu0 0.0
        %859 = vmatpush1.msra.mxu0 0.0
        %860 = vmatprep.subr.mxu0 0.0
        %861 = vmatpush1.msra.mxu0 0.0
        %862 = vmatprep.subr.mxu0 0.0
        %863 = vmatpush1.msra.mxu0 0.0
        %864 = vmatprep.subr.mxu0 0.0
        %865 = vmatpush1.msra.mxu0 0.0
        %866 = vmatprep.subr.mxu0 0.0
        %867 = vmatpush1.msra.mxu0 0.0
        %868 = vmatprep.subr.mxu0 0.0
        %869 = vmatpush1.msra.mxu0 0.0
        %870 = vmatprep.subr.mxu0 0.0
        %871 = vmatpush1.msra.mxu0 0.0
        %872 = vmatprep.subr.mxu0 0.0
        %873 = vmatpush1.msra.mxu0 0.0
        %874 = vmatprep.subr.mxu0 0.0
        %875 = vmatpush1.msra.mxu0 0.0
        %876 = vmatprep.subr.mxu0 0.0
        %877 = vmatpush1.msra.mxu0 0.0
        %878 = vmatprep.subr.mxu0 0.0
        %879 = vmatpush1.msra.mxu0 0.0
        %880 = vmatprep.subr.mxu0 0.0
        %881 = vmatpush1.msra.mxu0 0.0
        %882 = vmatprep.subr.mxu0 0.0
        %883 = vmatpush1.msra.mxu0 0.0
        %884 = vmatprep.subr.mxu0 0.0
        %885 = vmatpush1.msra.mxu0 0.0
        %886 = vmatprep.subr.mxu0 0.0
        %887 = vmatpush1.msra.mxu0 0.0
        %888 = vmatprep.subr.mxu0 0.0
        %889 = vmatpush1.msra.mxu0 0.0
        %890 = vmatprep.mubr.f32.mxu0 0.0
        %891 = vmatmul.mubr.f32.gmra.mrb[0].mxu0 %v753
        %v892 = vpop.f32.mrb[0].mxu0
        %v893 = vadd.f32 %v749, %v892
        %v894 = vpop.f32.mrb[0].mxu0
        %v895 = vadd.f32 %v749, %v894
        %896 = vdwg.mxu0
        %v897 = vmax.f32 %v822, 0.0
        %v898 = vmax.f32 %v824, 0.0
        %v899 = vmax.f32 %v893, 0.0
        %v900 = vmax.f32 %v895, 0.0
        %v901 = vld [vmem:[%s5] sm:$0xff]
        %903 = vset.pattern.permute.xlu0 0
        %904 = vperm.xlu0 %903, %v901
        %v905 = vpop.permute.xlu0 %904
        %v907 = vmul.f32 %v905, %v897
        %v908 = vmul.f32 %v905, %v898
        %v909 = vmul.f32 %v905, %v899
        %v910 = vmul.f32 %v905, %v900
        %v911 = vrot.slane %v907, 4
        %v912 = vadd.f32 %v907, %v911
        %v913 = vrot.slane %v912, 2
        %v914 = vadd.f32 %v912, %v913
        %v915 = vrot.slane %v914, 1
        %v916 = vadd.f32 %v914, %v915
        %v917 = vrot.slane %v908, 4
        %v918 = vadd.f32 %v908, %v917
        %v919 = vrot.slane %v918, 2
        %v920 = vadd.f32 %v918, %v919
        %v921 = vrot.slane %v920, 1
        %v922 = vadd.f32 %v920, %v921
        %v923 = vrot.slane %v909, 4
        %v924 = vadd.f32 %v909, %v923
        %v925 = vrot.slane %v924, 2
        %v926 = vadd.f32 %v924, %v925
        %v927 = vrot.slane %v926, 1
        %v928 = vadd.f32 %v926, %v927
        %v929 = vrot.slane %v910, 4
        %v930 = vadd.f32 %v910, %v929
        %v931 = vrot.slane %v930, 2
        %v932 = vadd.f32 %v930, %v931
        %v933 = vrot.slane %v932, 1
        %v934 = vadd.f32 %v932, %v933
        %s935 = sld [smem:[#allocation2]]
        %v936 = vstv %s935
        %v937 = vadd.f32 %v916, %v936
        %v938 = vadd.f32 %v922, %v936
        %v939 = vadd.f32 %v928, %v936
        %v940 = vadd.f32 %v934, %v936
        %v941 = vxor.u32 %v937, 2147483648
        %v942 = vxor.u32 %v938, 2147483648
        %v943 = vxor.u32 %v939, 2147483648
        %v944 = vxor.u32 %v940, 2147483648
        %v945 = vmul.f32 %v941, 1.442695
        %v946 = vpow.pop %v945
        %v947 = vmul.f32 %v942, 1.442695
        %v948 = vpow.pop %v947
        %v949 = vmul.f32 %v943, 1.442695
        %v950 = vpow.pop %v949
        %v951 = vmul.f32 %v944, 1.442695
        %v952 = vpow.pop %v951
        %v953 = vadd.f32 %v946, 1.0
        %v954 = vadd.f32 %v948, 1.0
        %v955 = vadd.f32 %v950, 1.0
        %v956 = vadd.f32 %v952, 1.0
        %v957 = vrcp.pop %v953
        %v958 = vmul.f32 1.0, %v957
        %v959 = vrcp.pop %v954
        %v960 = vmul.f32 1.0, %v959
        %v961 = vrcp.pop %v955
        %v962 = vmul.f32 1.0, %v961
        %v963 = vrcp.pop %v956
        %v964 = vmul.f32 1.0, %v963
        %v969 = vcombine.low %v958, %v960
        %v970 = vcombine.low %v962, %v964
        %v972 = vunpack.c.l.s4 1966171168
        %v973 = vunpack.c.0.s8 %v972
        %v974 = vlaneseq
        %v975 = vshrl.u32 %v974, 7
        %v976 = vsub.s32 %v973, %v975
        %v977 = vrot.slane %v969, %v976
        %v979 = vunpack.c.l.s4 1966171168
        %v980 = vunpack.c.0.s8 %v979
        %v981 = vlaneseq
        %v982 = vshrl.u32 %v981, 7
        %v983 = vsub.s32 %v980, %v982
        %v984 = vrot.slane %v970, %v983
        %v985 = vcombine.low %v977, %v984
        %v987 = vunpack.c.l.s4 1966171168
        %v988 = vunpack.c.0.s8 %v987
        %v989 = vlaneseq
        %v990 = vshrl.u32 %v989, 7
        %v991 = vsub.s32 %v988, %v990
        %v992 = vrot.slane %v985, %v991
        %v994 = vlaneseq
        %vm995 = vcmp.ge.s32.totalorder %v994, 0
        %vm996 = vcmp.lt.s32.totalorder %v994, 512
        %vm997 = vmand %vm995, %vm996
        %998 = vst.msk [vmem:[%s285] sm:$0xf] %vm997, %v992
        %s999 = sand.u32 %s182, 1
        %s1000 = scalar_lea.sflag [#allocation4], %s999
        %s1001 = sand.u32 %s182, 1
        %s1002 = smul.addr %s1001, 4
        %s1003 = scalar_lea.vmem [#allocation3], %s1002
        // Predicated region
        $region49: #{tpu_custom_call.1} parent=47 // pred_check
          %p1004 = pneg %p192
        $region50: #{tpu_custom_call.1} parent=47 // pred_check_branch
          %1006 = sbr.rel (%p1004) target = $region52
        $region51: #{tpu_custom_call.1} parent=47 // pred_region
          %s1007 = smul.u32 4, %s22
          %s1008 = ssub.s32 5, %s1007
          %p1009 = scmp.lt.s32.totalorder %s1008, 4
          %s1010 = scalar_select %p1009, %s1008, 4
          %s1011 = smul.u32 16, %s1010
          %s1013 = ssub.s32 64, %s1011
          %1014 = vsyncadd %s1000, %s1013
          %p1015 = scmp.ne.s32.totalorder 0, %s1011
          %s1016 = smul.addr %s1007, 16
          %s1017 = scalar_lea.hbm %s7, %s1016
          %s1018 = sshll.u32 %s1010, 4
          %s1019 = sshll.u32 %s1003, 4
          %s1020 = int_to_ptr.vmem [resolvable:$true] %s1019
          %1022 = dma.vmem_to_hbm [thread:$0]  (%p1015), %s1020, %s1018, %s1017, %s1000
        $region52: #{tpu_custom_call.1} parent=47 // pred_fallthru
          _
      $region48: #{tpu_custom_call.1} parent=5 // pred_fallthru
        _
      %p1023 = scmp.le.s32.totalorder 2, %s17
      // Predicated region
      $region53: #{tpu_custom_call.1} parent=5 // pred_check
        %p1024 = pneg %p1023
      $region54: #{tpu_custom_call.1} parent=5 // pred_check_branch
        %1026 = sbr.rel (%p1024) target = $region56
      $region55: #{tpu_custom_call.1} parent=5 // pred_region
        %s1027 = ssub.s32 %s17, 2
        // Predicated region
        $region57: #{tpu_custom_call.1} parent=55 // pred_check
          %p1028 = pneg %p198
        $region58: #{tpu_custom_call.1} parent=55 // pred_check_branch
          %1030 = sbr.rel (%p1028) target = $region60
        $region59: #{tpu_custom_call.1} parent=55 // pred_region
          %s1031 = sand.u32 %s183, 1
          %s1032 = scalar_lea.sflag [#allocation4], %s1031
          %s1033 = sand.u32 %s183, 1
          %s1034 = smul.addr %s1033, 4
          %s1035 = scalar_lea.vmem [#allocation3], %s1034
          %1036 = dma.done %s1032, 64
        $region60: #{tpu_custom_call.1} parent=55 // pred_fallthru
          _
      $region56: #{tpu_custom_call.1} parent=5 // pred_fallthru
        _
    $region6: #{tpu_custom_call.1} parent=1 // loop_footer
      %s21 = sadd.s32 1, %s17
    $region7: #{tpu_custom_call.1} parent=1 // loop_footer_branch
      %16 = sbr.rel target = $region3
    $region8: #{tpu_custom_call.1} parent=1 // loop_exit
      _
    %1037 = vsyncpa [#allocation4], 1
    %s1038 = scalar_lea.sflag [#allocation4], 1
    %1039 = vsyncpa %s1038, 1

</llo_original>
